<compile_context>
chip_gen: v7x
topology: tpu7x:2x2x1
jax: 0.10.0
libtpu: 0.0.40
codegen_flags: <defaults>
</compile_context>

<pallas_src>
import jax
import jax.numpy as jnp
from jax.experimental import pallas as pl
from jax.experimental.pallas import tpu as pltpu

IN_F = 768
HID_F = 384
OUT_F = 10
OUT_PAD = 128  # lane-dense padded fc2 width


def _round_up(x, m):
    return ((x + m - 1) // m) * m


def _mlp_kernel(x_ref, w1_ref, b1_ref, w2_ref, b2_ref, o_ref):
    # fc1: (TILE_B, 768) bf16 @ (768, 384) bf16 -> f32 accumulate; bias + ReLU in f32.
    h = jnp.dot(x_ref[...], w1_ref[...], preferred_element_type=jnp.float32)
    h = jnp.maximum(h + b1_ref[...], 0.0)
    # fc2 (padded to 128 lanes): cast hidden back to bf16 for the MXU, accumulate f32.
    y = jnp.dot(h.astype(w2_ref.dtype), w2_ref[...],
                preferred_element_type=jnp.float32)
    o_ref[...] = (y + b2_ref[...]).astype(o_ref.dtype)


def deepnet_forward(x, w1, b1, w2, b2, *, tile_b=256):
    """x: (B, 768) f32; w1: (768, 384); b1: (384,)/(1,384); w2: (384, 10); b2: (10,)/(1,10)."""
    B = x.shape[0]

    # bf16 weights/activations (f32 accumulation stays inside the kernel).
    x_bf = x.astype(jnp.bfloat16)
    w1_bf = jnp.asarray(w1, jnp.bfloat16)
    b1_f = jnp.asarray(b1, jnp.float32).reshape(1, HID_F)
    # Pad fc2 to a lane-dense 128-wide output (zero columns 10..127).
    w2_pad = jnp.zeros((HID_F, OUT_PAD), jnp.bfloat16)
    w2_pad = w2_pad.at[:, :OUT_F].set(jnp.asarray(w2, jnp.bfloat16))
    b2_pad = jnp.zeros((1, OUT_PAD), jnp.float32)
    b2_pad = b2_pad.at[:, :OUT_F].set(jnp.asarray(b2, jnp.float32).reshape(1, OUT_F))

    # Batch tiling: multiples of 16 (bf16 sublane packing); zero-pad batch as needed.
    tile = min(tile_b, _round_up(max(B, 1), 16))
    tile = _round_up(tile, 16)
    b_pad = _round_up(B, tile)
    if b_pad != B:
        x_bf = jnp.pad(x_bf, ((0, b_pad - B), (0, 0)))

    grid = (b_pad // tile,)
    flops = 2 * b_pad * (IN_F * HID_F + HID_F * OUT_PAD)
    bytes_accessed = (x_bf.size * 2 + w1_bf.size * 2 + w2_pad.size * 2
                      + b1_f.size * 4 + b2_pad.size * 4 + b_pad * OUT_PAD * 4)

    compiler_kwargs = dict(dimension_semantics=("parallel",))
    if tile > 512:
        # Only raise scoped VMEM when the per-tile working set could exceed default.
        compiler_kwargs["vmem_limit_bytes"] = 64 * 1024 * 1024

    out = pl.pallas_call(
        _mlp_kernel,
        out_shape=jax.ShapeDtypeStruct((b_pad, OUT_PAD), jnp.float32),
        grid_spec=pltpu.PrefetchScalarGridSpec(
            num_scalar_prefetch=0,
            grid=grid,
            in_specs=[
                pl.BlockSpec((tile, IN_F), lambda i: (i, 0)),      # x tile (double-buffered)
                pl.BlockSpec((IN_F, HID_F), lambda i: (0, 0)),     # w1 resident
                pl.BlockSpec((1, HID_F), lambda i: (0, 0)),        # b1 resident
                pl.BlockSpec((HID_F, OUT_PAD), lambda i: (0, 0)),  # w2 (padded) resident
                pl.BlockSpec((1, OUT_PAD), lambda i: (0, 0)),      # b2 (padded) resident
            ],
            out_specs=pl.BlockSpec((tile, OUT_PAD), lambda i: (i, 0)),
        ),
        compiler_params=pltpu.CompilerParams(**compiler_kwargs),
        cost_estimate=pl.CostEstimate(
            flops=flops, transcendentals=0, bytes_accessed=bytes_accessed),
    )(x_bf, w1_bf, b1_f, w2_pad, b2_pad)

    return out[:B, :OUT_F]


def init_params(key):
    # Deterministic init mimicking nn.Linear's U(-1/sqrt(fan_in), 1/sqrt(fan_in)).
    k1, k2, k3, k4 = jax.random.split(key, 4)
    lim1 = 1.0 / jnp.sqrt(768.0)
    lim2 = 1.0 / jnp.sqrt(384.0)
    w1 = jax.random.uniform(k1, (IN_F, HID_F), jnp.float32, -lim1, lim1)   # (in, out)
    b1 = jax.random.uniform(k2, (1, HID_F), jnp.float32, -lim1, lim1)
    w2 = jax.random.uniform(k3, (HID_F, OUT_F), jnp.float32, -lim2, lim2)  # (in, out)
    b2 = jax.random.uniform(k4, (1, OUT_F), jnp.float32, -lim2, lim2)
    return w1, b1, w2, b2


if __name__ == "__main__":
    key = jax.random.PRNGKey(0)
    pkey, xkey = jax.random.split(key)
    w1, b1, w2, b2 = init_params(pkey)

    batch = 8
    x = jax.random.normal(xkey, (batch, IN_F), jnp.float32)

    y = deepnet_forward(x, w1, b1, w2, b2)
    jax.block_until_ready(y)

    # Reference check against plain f32 JAX (same math as the PyTorch module).
    # Tolerances loosened because weights/activations go through bf16 on the MXU.
    y_ref = jnp.maximum(x @ w1 + b1, 0.0) @ w2 + b2
    assert y.shape == (batch, OUT_F)
    assert jnp.allclose(y, y_ref, atol=3e-2, rtol=3e-2), (
        float(jnp.max(jnp.abs(y - y_ref))))

    print("KERNEL_OK")
</pallas_src>

<mosaic_0001>
module attributes {stable_mosaic.version = 11 : i64} {
  func.func @_mlp_kernel(%arg0: i32, %arg1: memref<16x768xbf16, #tpu.memory_space<vmem>>, %arg2: memref<768x384xbf16, #tpu.memory_space<vmem>>, %arg3: memref<1x384xf32, #tpu.memory_space<vmem>>, %arg4: memref<384x128xbf16, #tpu.memory_space<vmem>>, %arg5: memref<1x128xf32, #tpu.memory_space<vmem>>, %arg6: memref<16x128xf32, #tpu.memory_space<vmem>>) attributes {dimension_semantics = [#tpu.dimension_semantics<parallel>], iteration_bounds = array<i64: 1>, scalar_prefetch = 0 : i64, scratch_operands = 0 : i64, tpu.core_type = #tpu.core_type<tc>, window_params = [{transform_indices = @transform_0, window_bounds = array<i64: 16, 768>}, {pipeline_mode = #tpu.pipeline_mode<synchronous>, transform_indices = @transform_1, window_bounds = array<i64: 768, 384>}, {pipeline_mode = #tpu.pipeline_mode<synchronous>, transform_indices = @transform_2, window_bounds = array<i64: 1, 384>}, {pipeline_mode = #tpu.pipeline_mode<synchronous>, transform_indices = @transform_3, window_bounds = array<i64: 384, 128>}, {pipeline_mode = #tpu.pipeline_mode<synchronous>, transform_indices = @transform_4, window_bounds = array<i64: 1, 128>}, {transform_indices = @transform_5, window_bounds = array<i64: 16, 128>}]} {
    %c0 = arith.constant 0 : index
    %c0_0 = arith.constant 0 : index
    %0 = vector.load %arg1[%c0, %c0_0] : memref<16x768xbf16, #tpu.memory_space<vmem>>, vector<16x768xbf16>
    %c0_1 = arith.constant 0 : index
    %c0_2 = arith.constant 0 : index
    %1 = vector.load %arg2[%c0_1, %c0_2] : memref<768x384xbf16, #tpu.memory_space<vmem>>, vector<768x384xbf16>
    %cst = arith.constant dense<0.000000e+00> : vector<16x384xf32>
    %2 = tpu.matmul %0, %1, %cst {dimension_numbers = #tpu.dot_dimension_numbers<[1], [0], [0], [1], [0, 0, 1, 1], [], []>} : vector<16x768xbf16>, vector<768x384xbf16>, vector<16x384xf32> -> vector<16x384xf32>
    %c0_3 = arith.constant 0 : index
    %c0_4 = arith.constant 0 : index
    %3 = vector.load %arg3[%c0_3, %c0_4] : memref<1x384xf32, #tpu.memory_space<vmem>>, vector<1x384xf32>
    %4 = vector.broadcast %3 : vector<1x384xf32> to vector<16x384xf32>
    %5 = arith.addf %2, %4 : vector<16x384xf32>
    %cst_5 = arith.constant 0.000000e+00 : f32
    %6 = vector.broadcast %cst_5 : f32 to vector<16x384xf32>
    %7 = arith.maximumf %5, %6 : vector<16x384xf32>
    %8 = arith.truncf %7 : vector<16x384xf32> to vector<16x384xbf16>
    %c0_6 = arith.constant 0 : index
    %c0_7 = arith.constant 0 : index
    %9 = vector.load %arg4[%c0_6, %c0_7] : memref<384x128xbf16, #tpu.memory_space<vmem>>, vector<384x128xbf16>
    %cst_8 = arith.constant dense<0.000000e+00> : vector<16x128xf32>
    %10 = tpu.matmul %8, %9, %cst_8 {dimension_numbers = #tpu.dot_dimension_numbers<[1], [0], [0], [1], [0, 0, 1, 1], [], []>} : vector<16x384xbf16>, vector<384x128xbf16>, vector<16x128xf32> -> vector<16x128xf32>
    %c0_9 = arith.constant 0 : index
    %c0_10 = arith.constant 0 : index
    %11 = vector.load %arg5[%c0_9, %c0_10] : memref<1x128xf32, #tpu.memory_space<vmem>>, vector<1x128xf32>
    %12 = vector.broadcast %11 : vector<1x128xf32> to vector<16x128xf32>
    %13 = arith.addf %10, %12 : vector<16x128xf32>
    %c0_11 = arith.constant 0 : index
    %c0_12 = arith.constant 0 : index
    %14 = vector.load %arg6[%c0_11, %c0_12] : memref<16x128xf32, #tpu.memory_space<vmem>>, vector<16x128xf32>
    tpu.vector_store %arg6[%c0_11, %c0_12], %13 {strides = array<i32>} : memref<16x128xf32, #tpu.memory_space<vmem>>, vector<16x128xf32>,
    return
  }
  func.func @transform_0(%arg0: i32) -> (i32, i32) {
    %c0_i32 = arith.constant 0 : i32
    %c0_i32_0 = arith.constant 0 : i32
    return %arg0, %c0_i32 : i32, i32
  }
  func.func @transform_1(%arg0: i32) -> (i32, i32) {
    %c0_i32 = arith.constant 0 : i32
    %c0_i32_0 = arith.constant 0 : i32
    %c0_i32_1 = arith.constant 0 : i32
    return %c0_i32, %c0_i32_0 : i32, i32
  }
  func.func @transform_2(%arg0: i32) -> (i32, i32) {
    %c0_i32 = arith.constant 0 : i32
    %c0_i32_0 = arith.constant 0 : i32
    %c0_i32_1 = arith.constant 0 : i32
    return %c0_i32, %c0_i32_0 : i32, i32
  }
  func.func @transform_3(%arg0: i32) -> (i32, i32) {
    %c0_i32 = arith.constant 0 : i32
    %c0_i32_0 = arith.constant 0 : i32
    %c0_i32_1 = arith.constant 0 : i32
    return %c0_i32, %c0_i32_0 : i32, i32
  }
  func.func @transform_4(%arg0: i32) -> (i32, i32) {
    %c0_i32 = arith.constant 0 : i32
    %c0_i32_0 = arith.constant 0 : i32
    %c0_i32_1 = arith.constant 0 : i32
    return %c0_i32, %c0_i32_0 : i32, i32
  }
  func.func @transform_5(%arg0: i32) -> (i32, i32) {
    %c0_i32 = arith.constant 0 : i32
    %c0_i32_0 = arith.constant 0 : i32
    return %arg0, %c0_i32 : i32, i32
  }
}

</mosaic_0001>

<llo_original>
// kernel: tpu_custom_call.1
$region0: #{tpu_custom_call.1}
  #allocation0 [shape = 'u32[]', space=smem, size = 0x4, offset = 0x4, fixed_abs, tag = 'smem constant byte address 0x4 - core index']
  #allocation1 [shape = 'u32[144,128]{1,0:T(1,128)}', space=vmem, size = 0x12000, scoped, tag = 'internal scratch']
  %s0 = inlined_call_operand.hbm [shape: bf16[16,768], index: 0, kind: input, shape index: {}]
  %s1 = inlined_call_operand.hbm [shape: bf16[768,384], index: 1, kind: input, shape index: {}]
  %s2 = inlined_call_operand.vmem [shape: f32[1,384], index: 2, kind: input, shape index: {}]
  %s3 = inlined_call_operand.hbm [shape: bf16[384,128], index: 3, kind: input, shape index: {}]
  %s4 = inlined_call_operand.vmem [shape: f32[1,128], index: 4, kind: input, shape index: {}]
  %s5 = inlined_call_operand.hbm [shape: f32[16,128], index: 5, kind: output, shape index: {}]
  %s6 = sld [smem:[#allocation0]]
  $region42: #{tpu_custom_call.1} parent=0
    _
  %s8 = ssub.s32 1, %s6
  %s9 = scalar_select 0, %s8, %s6
  $region1: #{tpu_custom_call.1} parent=0
    #allocation2 [shape = 'u8[24576]{0}', space=vmem, size = 0x6000, scoped, tag = 'input window, operand 0, single buffered']
    #allocation3 [shape = 's32[1]{0}', space=sflag, size = 0x4, scoped, tag = 'scoped memory for tpu_custom_call.1']
    #allocation4 [shape = 's32[1]{0}', space=sflag, size = 0x4, scoped, tag = 'scoped memory for tpu_custom_call.1']
    #allocation5 [shape = 'u8[589824]{0}', space=vmem, size = 0x90000, scoped, tag = 'input window, operand 1, single buffered']
    #allocation6 [shape = 's32[1]{0}', space=sflag, size = 0x4, scoped, tag = 'scoped memory for tpu_custom_call.1']
    #allocation7 [shape = 'u8[98304]{0}', space=vmem, size = 0x18000, scoped, tag = 'input window, operand 3, single buffered']
    #allocation8 [shape = 'u8[8192]{0}', space=vmem, size = 0x2000, scoped, tag = 'output window, operand 0, single buffered']
    %10 = vsyncpa [#allocation3], 0
    %11 = vsyncpa [#allocation6], 0
    %12 = vsyncpa [#allocation4], 0
    // Predicated region
    $region2: #{tpu_custom_call.1} parent=1 // pred_check
      _
    $region3: #{tpu_custom_call.1} parent=1 // pred_check_branch
      %14 = sbr.rel (0) target = $region5
    $region4: #{tpu_custom_call.1} parent=1 // pred_region
      %s16 = ssub.s32 768, 768
      %17 = vsyncadd [#allocation3], %s16
      %s18 = sshll.u32 [#allocation2], 4
      %s19 = int_to_ptr.vmem [resolvable:$true] %s18
      %24 = dma.hbm_to_vmem [thread:$0]  %s0, 768, %s19, [#allocation3], 384, 384, 24
    $region5: #{tpu_custom_call.1} parent=1 // pred_fallthru
      _
    // Predicated region
    $region6: #{tpu_custom_call.1} parent=1 // pred_check
      _
    $region7: #{tpu_custom_call.1} parent=1 // pred_check_branch
      %26 = sbr.rel (0) target = $region9
    $region8: #{tpu_custom_call.1} parent=1 // pred_region
      %s28 = ssub.s32 18432, 18432
      %29 = vsyncadd [#allocation6], %s28
      %s30 = sshll.u32 [#allocation5], 4
      %s31 = int_to_ptr.vmem [resolvable:$true] %s30
      %36 = dma.hbm_to_vmem [thread:$0]  %s1, 18432, %s31, [#allocation6], 192, 192, 12
    $region9: #{tpu_custom_call.1} parent=1 // pred_fallthru
      _
    // Predicated region
    $region10: #{tpu_custom_call.1} parent=1 // pred_check
      _
    $region11: #{tpu_custom_call.1} parent=1 // pred_check_branch
      %38 = sbr.rel (0) target = $region13
    $region12: #{tpu_custom_call.1} parent=1 // pred_region
      _
    $region13: #{tpu_custom_call.1} parent=1 // pred_fallthru
      _
    // Predicated region
    $region14: #{tpu_custom_call.1} parent=1 // pred_check
      _
    $region15: #{tpu_custom_call.1} parent=1 // pred_check_branch
      %40 = sbr.rel (0) target = $region17
    $region16: #{tpu_custom_call.1} parent=1 // pred_region
      %s42 = ssub.s32 3072, 3072
      %43 = vsyncadd [#allocation6], %s42
      %s44 = sshll.u32 [#allocation7], 4
      %s45 = int_to_ptr.vmem [resolvable:$true] %s44
      %50 = dma.hbm_to_vmem [thread:$0]  %s3, 3072, %s45, [#allocation6], 64, 64, 4
    $region17: #{tpu_custom_call.1} parent=1 // pred_fallthru
      _
    // Predicated region
    $region18: #{tpu_custom_call.1} parent=1 // pred_check
      _
    $region19: #{tpu_custom_call.1} parent=1 // pred_check_branch
      %52 = sbr.rel (0) target = $region21
    $region20: #{tpu_custom_call.1} parent=1 // pred_region
      _
    $region21: #{tpu_custom_call.1} parent=1 // pred_fallthru
      _
    // Predicated region
    $region22: #{tpu_custom_call.1} parent=1 // pred_check
      _
    $region23: #{tpu_custom_call.1} parent=1 // pred_check_branch
      %54 = sbr.rel (0) target = $region25
    $region24: #{tpu_custom_call.1} parent=1 // pred_region
      %55 = dma.done [#allocation3], 768
    $region25: #{tpu_custom_call.1} parent=1 // pred_fallthru
      _
    // Predicated region
    $region26: #{tpu_custom_call.1} parent=1 // pred_check
      _
    $region27: #{tpu_custom_call.1} parent=1 // pred_check_branch
      %57 = sbr.rel (0) target = $region29
    $region28: #{tpu_custom_call.1} parent=1 // pred_region
      %58 = dma.done [#allocation6], 18432
    $region29: #{tpu_custom_call.1} parent=1 // pred_fallthru
      _
    // Predicated region
    $region30: #{tpu_custom_call.1} parent=1 // pred_check
      _
    $region31: #{tpu_custom_call.1} parent=1 // pred_check_branch
      %60 = sbr.rel (0) target = $region33
    $region32: #{tpu_custom_call.1} parent=1 // pred_region
      %61 = dma.done [#allocation6], 3072
    $region33: #{tpu_custom_call.1} parent=1 // pred_fallthru
      _
    %v63 = vld [vmem:[#allocation2] sm:$0xff]
    %v64 = vld [vmem:[#allocation2 + $0x8] sm:$0xff]
    %v65 = vld [vmem:[#allocation2 + $0x10] sm:$0xff]
    %v66 = vld [vmem:[#allocation2 + $0x18] sm:$0xff]
    %v67 = vld [vmem:[#allocation2 + $0x20] sm:$0xff]
    %v68 = vld [vmem:[#allocation2 + $0x28] sm:$0xff]
    %v69 = vld [vmem:[#allocation5] sm:$0xff]
    %v70 = vld [vmem:[#allocation5 + $0x8] sm:$0xf]
    %v71 = vld [vmem:[#allocation5 + $0xc] sm:$0xff]
    %v72 = vld [vmem:[#allocation5 + $0x14] sm:$0xf]
    %v73 = vld [vmem:[#allocation5 + $0x18] sm:$0xff]
    %v74 = vld [vmem:[#allocation5 + $0x20] sm:$0xf]
    %v75 = vld [vmem:[#allocation5 + $0x24] sm:$0xff]
    %v76 = vld [vmem:[#allocation5 + $0x2c] sm:$0xf]
    %v77 = vld [vmem:[#allocation5 + $0x30] sm:$0xff]
    %v78 = vld [vmem:[#allocation5 + $0x38] sm:$0xf]
    %v79 = vld [vmem:[#allocation5 + $0x3c] sm:$0xff]
    %v80 = vld [vmem:[#allocation5 + $0x44] sm:$0xf]
    %v81 = vld [vmem:[#allocation5 + $0x48] sm:$0xff]
    %v82 = vld [vmem:[#allocation5 + $0x50] sm:$0xf]
    %v83 = vld [vmem:[#allocation5 + $0x54] sm:$0xff]
    %v84 = vld [vmem:[#allocation5 + $0x5c] sm:$0xf]
    %v85 = vld [vmem:[#allocation5 + $0x60] sm:$0xff]
    %v86 = vld [vmem:[#allocation5 + $0x68] sm:$0xf]
    %v87 = vld [vmem:[#allocation5 + $0x6c] sm:$0xff]
    %v88 = vld [vmem:[#allocation5 + $0x74] sm:$0xf]
    %v89 = vld [vmem:[#allocation5 + $0x78] sm:$0xff]
    %v90 = vld [vmem:[#allocation5 + $0x80] sm:$0xf]
    %v91 = vld [vmem:[#allocation5 + $0x84] sm:$0xff]
    %v92 = vld [vmem:[#allocation5 + $0x8c] sm:$0xf]
    %v93 = vld [vmem:[#allocation5 + $0x90] sm:$0xff]
    %v94 = vld [vmem:[#allocation5 + $0x98] sm:$0xf]
    %v95 = vld [vmem:[#allocation5 + $0x9c] sm:$0xff]
    %v96 = vld [vmem:[#allocation5 + $0xa4] sm:$0xf]
    %v97 = vld [vmem:[#allocation5 + $0xa8] sm:$0xff]
    %v98 = vld [vmem:[#allocation5 + $0xb0] sm:$0xf]
    %v99 = vld [vmem:[#allocation5 + $0xb4] sm:$0xff]
    %v100 = vld [vmem:[#allocation5 + $0xbc] sm:$0xf]
    %v101 = vld [vmem:[#allocation5 + $0xc0] sm:$0xff]
    %v102 = vld [vmem:[#allocation5 + $0xc8] sm:$0xf]
    %v103 = vld [vmem:[#allocation5 + $0xcc] sm:$0xff]
    %v104 = vld [vmem:[#allocation5 + $0xd4] sm:$0xf]
    %v105 = vld [vmem:[#allocation5 + $0xd8] sm:$0xff]
    %v106 = vld [vmem:[#allocation5 + $0xe0] sm:$0xf]
    %v107 = vld [vmem:[#allocation5 + $0xe4] sm:$0xff]
    %v108 = vld [vmem:[#allocation5 + $0xec] sm:$0xf]
    %v109 = vld [vmem:[#allocation5 + $0xf0] sm:$0xff]
    %v110 = vld [vmem:[#allocation5 + $0xf8] sm:$0xf]
    %v111 = vld [vmem:[#allocation5 + $0xfc] sm:$0xff]
    %v112 = vld [vmem:[#allocation5 + $0x104] sm:$0xf]
    %v113 = vld [vmem:[#allocation5 + $0x108] sm:$0xff]
    %v114 = vld [vmem:[#allocation5 + $0x110] sm:$0xf]
    %v115 = vld [vmem:[#allocation5 + $0x114] sm:$0xff]
    %v116 = vld [vmem:[#allocation5 + $0x11c] sm:$0xf]
    %v117 = vld [vmem:[#allocation5 + $0x120] sm:$0xff]
    %v118 = vld [vmem:[#allocation5 + $0x128] sm:$0xf]
    %v119 = vld [vmem:[#allocation5 + $0x12c] sm:$0xff]
    %v120 = vld [vmem:[#allocation5 + $0x134] sm:$0xf]
    %v121 = vld [vmem:[#allocation5 + $0x138] sm:$0xff]
    %v122 = vld [vmem:[#allocation5 + $0x140] sm:$0xf]
    %v123 = vld [vmem:[#allocation5 + $0x144] sm:$0xff]
    %v124 = vld [vmem:[#allocation5 + $0x14c] sm:$0xf]
    %v125 = vld [vmem:[#allocation5 + $0x150] sm:$0xff]
    %v126 = vld [vmem:[#allocation5 + $0x158] sm:$0xf]
    %v127 = vld [vmem:[#allocation5 + $0x15c] sm:$0xff]
    %v128 = vld [vmem:[#allocation5 + $0x164] sm:$0xf]
    %v129 = vld [vmem:[#allocation5 + $0x168] sm:$0xff]
    %v130 = vld [vmem:[#allocation5 + $0x170] sm:$0xf]
    %v131 = vld [vmem:[#allocation5 + $0x174] sm:$0xff]
    %v132 = vld [vmem:[#allocation5 + $0x17c] sm:$0xf]
    %v133 = vld [vmem:[#allocation5 + $0x180] sm:$0xff]
    %v134 = vld [vmem:[#allocation5 + $0x188] sm:$0xf]
    %v135 = vld [vmem:[#allocation5 + $0x18c] sm:$0xff]
    %v136 = vld [vmem:[#allocation5 + $0x194] sm:$0xf]
    %v137 = vld [vmem:[#allocation5 + $0x198] sm:$0xff]
    %v138 = vld [vmem:[#allocation5 + $0x1a0] sm:$0xf]
    %v139 = vld [vmem:[#allocation5 + $0x1a4] sm:$0xff]
    %v140 = vld [vmem:[#allocation5 + $0x1ac] sm:$0xf]
    %v141 = vld [vmem:[#allocation5 + $0x1b0] sm:$0xff]
    %v142 = vld [vmem:[#allocation5 + $0x1b8] sm:$0xf]
    %v143 = vld [vmem:[#allocation5 + $0x1bc] sm:$0xff]
    %v144 = vld [vmem:[#allocation5 + $0x1c4] sm:$0xf]
    %v145 = vld [vmem:[#allocation5 + $0x1c8] sm:$0xff]
    %v146 = vld [vmem:[#allocation5 + $0x1d0] sm:$0xf]
    %v147 = vld [vmem:[#allocation5 + $0x1d4] sm:$0xff]
    %v148 = vld [vmem:[#allocation5 + $0x1dc] sm:$0xf]
    %v149 = vld [vmem:[#allocation5 + $0x1e0] sm:$0xff]
    %v150 = vld [vmem:[#allocation5 + $0x1e8] sm:$0xf]
    %v151 = vld [vmem:[#allocation5 + $0x1ec] sm:$0xff]
    %v152 = vld [vmem:[#allocation5 + $0x1f4] sm:$0xf]
    %v153 = vld [vmem:[#allocation5 + $0x1f8] sm:$0xff]
    %v154 = vld [vmem:[#allocation5 + $0x200] sm:$0xf]
    %v155 = vld [vmem:[#allocation5 + $0x204] sm:$0xff]
    %v156 = vld [vmem:[#allocation5 + $0x20c] sm:$0xf]
    %v157 = vld [vmem:[#allocation5 + $0x210] sm:$0xff]
    %v158 = vld [vmem:[#allocation5 + $0x218] sm:$0xf]
    %v159 = vld [vmem:[#allocation5 + $0x21c] sm:$0xff]
    %v160 = vld [vmem:[#allocation5 + $0x224] sm:$0xf]
    %v161 = vld [vmem:[#allocation5 + $0x228] sm:$0xff]
    %v162 = vld [vmem:[#allocation5 + $0x230] sm:$0xf]
    %v163 = vld [vmem:[#allocation5 + $0x234] sm:$0xff]
    %v164 = vld [vmem:[#allocation5 + $0x23c] sm:$0xf]
    %v165 = vld [vmem:[#allocation5 + $0x240] sm:$0xff]
    %v166 = vld [vmem:[#allocation5 + $0x248] sm:$0xf]
    %v167 = vld [vmem:[#allocation5 + $0x24c] sm:$0xff]
    %v168 = vld [vmem:[#allocation5 + $0x254] sm:$0xf]
    %v169 = vld [vmem:[#allocation5 + $0x258] sm:$0xff]
    %v170 = vld [vmem:[#allocation5 + $0x260] sm:$0xf]
    %v171 = vld [vmem:[#allocation5 + $0x264] sm:$0xff]
    %v172 = vld [vmem:[#allocation5 + $0x26c] sm:$0xf]
    %v173 = vld [vmem:[#allocation5 + $0x270] sm:$0xff]
    %v174 = vld [vmem:[#allocation5 + $0x278] sm:$0xf]
    %v175 = vld [vmem:[#allocation5 + $0x27c] sm:$0xff]
    %v176 = vld [vmem:[#allocation5 + $0x284] sm:$0xf]
    %v177 = vld [vmem:[#allocation5 + $0x288] sm:$0xff]
    %v178 = vld [vmem:[#allocation5 + $0x290] sm:$0xf]
    %v179 = vld [vmem:[#allocation5 + $0x294] sm:$0xff]
    %v180 = vld [vmem:[#allocation5 + $0x29c] sm:$0xf]
    %v181 = vld [vmem:[#allocation5 + $0x2a0] sm:$0xff]
    %v182 = vld [vmem:[#allocation5 + $0x2a8] sm:$0xf]
    %v183 = vld [vmem:[#allocation5 + $0x2ac] sm:$0xff]
    %v184 = vld [vmem:[#allocation5 + $0x2b4] sm:$0xf]
    %v185 = vld [vmem:[#allocation5 + $0x2b8] sm:$0xff]
    %v186 = vld [vmem:[#allocation5 + $0x2c0] sm:$0xf]
    %v187 = vld [vmem:[#allocation5 + $0x2c4] sm:$0xff]
    %v188 = vld [vmem:[#allocation5 + $0x2cc] sm:$0xf]
    %v189 = vld [vmem:[#allocation5 + $0x2d0] sm:$0xff]
    %v190 = vld [vmem:[#allocation5 + $0x2d8] sm:$0xf]
    %v191 = vld [vmem:[#allocation5 + $0x2dc] sm:$0xff]
    %v192 = vld [vmem:[#allocation5 + $0x2e4] sm:$0xf]
    %v193 = vld [vmem:[#allocation5 + $0x2e8] sm:$0xff]
    %v194 = vld [vmem:[#allocation5 + $0x2f0] sm:$0xf]
    %v195 = vld [vmem:[#allocation5 + $0x2f4] sm:$0xff]
    %v196 = vld [vmem:[#allocation5 + $0x2fc] sm:$0xf]
    %v197 = vld [vmem:[#allocation5 + $0x300] sm:$0xff]
    %v198 = vld [vmem:[#allocation5 + $0x308] sm:$0xf]
    %v199 = vld [vmem:[#allocation5 + $0x30c] sm:$0xff]
    %v200 = vld [vmem:[#allocation5 + $0x314] sm:$0xf]
    %v201 = vld [vmem:[#allocation5 + $0x318] sm:$0xff]
    %v202 = vld [vmem:[#allocation5 + $0x320] sm:$0xf]
    %v203 = vld [vmem:[#allocation5 + $0x324] sm:$0xff]
    %v204 = vld [vmem:[#allocation5 + $0x32c] sm:$0xf]
    %v205 = vld [vmem:[#allocation5 + $0x330] sm:$0xff]
    %v206 = vld [vmem:[#allocation5 + $0x338] sm:$0xf]
    %v207 = vld [vmem:[#allocation5 + $0x33c] sm:$0xff]
    %v208 = vld [vmem:[#allocation5 + $0x344] sm:$0xf]
    %v209 = vld [vmem:[#allocation5 + $0x348] sm:$0xff]
    %v210 = vld [vmem:[#allocation5 + $0x350] sm:$0xf]
    %v211 = vld [vmem:[#allocation5 + $0x354] sm:$0xff]
    %v212 = vld [vmem:[#allocation5 + $0x35c] sm:$0xf]
    %v213 = vld [vmem:[#allocation5 + $0x360] sm:$0xff]
    %v214 = vld [vmem:[#allocation5 + $0x368] sm:$0xf]
    %v215 = vld [vmem:[#allocation5 + $0x36c] sm:$0xff]
    %v216 = vld [vmem:[#allocation5 + $0x374] sm:$0xf]
    %v217 = vld [vmem:[#allocation5 + $0x378] sm:$0xff]
    %v218 = vld [vmem:[#allocation5 + $0x380] sm:$0xf]
    %v219 = vld [vmem:[#allocation5 + $0x384] sm:$0xff]
    %v220 = vld [vmem:[#allocation5 + $0x38c] sm:$0xf]
    %v221 = vld [vmem:[#allocation5 + $0x390] sm:$0xff]
    %v222 = vld [vmem:[#allocation5 + $0x398] sm:$0xf]
    %v223 = vld [vmem:[#allocation5 + $0x39c] sm:$0xff]
    %v224 = vld [vmem:[#allocation5 + $0x3a4] sm:$0xf]
    %v225 = vld [vmem:[#allocation5 + $0x3a8] sm:$0xff]
    %v226 = vld [vmem:[#allocation5 + $0x3b0] sm:$0xf]
    %v227 = vld [vmem:[#allocation5 + $0x3b4] sm:$0xff]
    %v228 = vld [vmem:[#allocation5 + $0x3bc] sm:$0xf]
    %v229 = vld [vmem:[#allocation5 + $0x3c0] sm:$0xff]
    %v230 = vld [vmem:[#allocation5 + $0x3c8] sm:$0xf]
    %v231 = vld [vmem:[#allocation5 + $0x3cc] sm:$0xff]
    %v232 = vld [vmem:[#allocation5 + $0x3d4] sm:$0xf]
    %v233 = vld [vmem:[#allocation5 + $0x3d8] sm:$0xff]
    %v234 = vld [vmem:[#allocation5 + $0x3e0] sm:$0xf]
    %v235 = vld [vmem:[#allocation5 + $0x3e4] sm:$0xff]
    %v236 = vld [vmem:[#allocation5 + $0x3ec] sm:$0xf]
    %v237 = vld [vmem:[#allocation5 + $0x3f0] sm:$0xff]
    %v238 = vld [vmem:[#allocation5 + $0x3f8] sm:$0xf]
    %v239 = vld [vmem:[#allocation5 + $0x3fc] sm:$0xff]
    %v240 = vld [vmem:[#allocation5 + $0x404] sm:$0xf]
    %v241 = vld [vmem:[#allocation5 + $0x408] sm:$0xff]
    %v242 = vld [vmem:[#allocation5 + $0x410] sm:$0xf]
    %v243 = vld [vmem:[#allocation5 + $0x414] sm:$0xff]
    %v244 = vld [vmem:[#allocation5 + $0x41c] sm:$0xf]
    %v245 = vld [vmem:[#allocation5 + $0x420] sm:$0xff]
    %v246 = vld [vmem:[#allocation5 + $0x428] sm:$0xf]
    %v247 = vld [vmem:[#allocation5 + $0x42c] sm:$0xff]
    %v248 = vld [vmem:[#allocation5 + $0x434] sm:$0xf]
    %v249 = vld [vmem:[#allocation5 + $0x438] sm:$0xff]
    %v250 = vld [vmem:[#allocation5 + $0x440] sm:$0xf]
    %v251 = vld [vmem:[#allocation5 + $0x444] sm:$0xff]
    %v252 = vld [vmem:[#allocation5 + $0x44c] sm:$0xf]
    %v253 = vld [vmem:[#allocation5 + $0x450] sm:$0xff]
    %v254 = vld [vmem:[#allocation5 + $0x458] sm:$0xf]
    %v255 = vld [vmem:[#allocation5 + $0x45c] sm:$0xff]
    %v256 = vld [vmem:[#allocation5 + $0x464] sm:$0xf]
    %v257 = vld [vmem:[#allocation5 + $0x468] sm:$0xff]
    %v258 = vld [vmem:[#allocation5 + $0x470] sm:$0xf]
    %v259 = vld [vmem:[#allocation5 + $0x474] sm:$0xff]
    %v260 = vld [vmem:[#allocation5 + $0x47c] sm:$0xf]
    %v261 = vld [vmem:[%s2] sm:$0x7]
    %v263 = vlaneseq
    %v264 = vshrl.u32 %v263, 7
    %v265 = vsub.s32 0, %v264
    %v266 = vrot.slane %v261, %v265
    %v267 = vlaneseq
    %v268 = vshrl.u32 %v267, 7
    %v269 = vsub.s32 1, %v268
    %v270 = vrot.slane %v261, %v269
    %v271 = vlaneseq
    %v272 = vshrl.u32 %v271, 7
    %v273 = vsub.s32 2, %v272
    %v274 = vrot.slane %v261, %v273
    %v284 = vunpack.c.l.b16 %v63
    %v285 = vunpack.c.h.b16 %v63
    %v286 = vunpack.c.l.b16 %v64
    %v287 = vunpack.c.h.b16 %v64
    %v288 = vunpack.c.l.b16 %v65
    %v289 = vunpack.c.h.b16 %v65
    %v290 = vunpack.c.l.b16 %v66
    %v291 = vunpack.c.h.b16 %v66
    %v292 = vunpack.c.l.b16 %v67
    %v293 = vunpack.c.h.b16 %v67
    %v294 = vunpack.c.l.b16 %v68
    %v295 = vunpack.c.h.b16 %v68
    %v296 = vpack.c.b16 %v290, %v284
    %v297 = vpack.c.b16 %v291, %v285
    %v298 = vpack.c.b16 %v292, %v286
    %v299 = vpack.c.b16 %v293, %v287
    %v300 = vpack.c.b16 %v294, %v288
    %v301 = vpack.c.b16 %v295, %v289
    %v500 = vunpack.c.l.b16 %v69
    %v501 = vunpack.c.h.b16 %v69
    %v502 = vunpack.c.l.b16 %v70
    %v503 = vunpack.c.l.b16 %v71
    %v504 = vunpack.c.h.b16 %v71
    %v505 = vunpack.c.l.b16 %v72
    %v506 = vunpack.c.l.b16 %v73
    %v507 = vunpack.c.h.b16 %v73
    %v508 = vunpack.c.l.b16 %v74
    %v509 = vunpack.c.l.b16 %v75
    %v510 = vunpack.c.h.b16 %v75
    %v511 = vunpack.c.l.b16 %v76
    %v512 = vunpack.c.l.b16 %v77
    %v513 = vunpack.c.h.b16 %v77
    %v514 = vunpack.c.l.b16 %v78
    %v515 = vunpack.c.l.b16 %v79
    %v516 = vunpack.c.h.b16 %v79
    %v517 = vunpack.c.l.b16 %v80
    %v518 = vunpack.c.l.b16 %v81
    %v519 = vunpack.c.h.b16 %v81
    %v520 = vunpack.c.l.b16 %v82
    %v521 = vunpack.c.l.b16 %v83
    %v522 = vunpack.c.h.b16 %v83
    %v523 = vunpack.c.l.b16 %v84
    %v524 = vunpack.c.l.b16 %v85
    %v525 = vunpack.c.h.b16 %v85
    %v526 = vunpack.c.l.b16 %v86
    %v527 = vunpack.c.l.b16 %v87
    %v528 = vunpack.c.h.b16 %v87
    %v529 = vunpack.c.l.b16 %v88
    %v530 = vunpack.c.l.b16 %v89
    %v531 = vunpack.c.h.b16 %v89
    %v532 = vunpack.c.l.b16 %v90
    %v533 = vunpack.c.l.b16 %v91
    %v534 = vunpack.c.h.b16 %v91
    %v535 = vunpack.c.l.b16 %v92
    %v536 = vunpack.c.l.b16 %v93
    %v537 = vunpack.c.h.b16 %v93
    %v538 = vunpack.c.l.b16 %v94
    %v539 = vunpack.c.l.b16 %v95
    %v540 = vunpack.c.h.b16 %v95
    %v541 = vunpack.c.l.b16 %v96
    %v542 = vunpack.c.l.b16 %v97
    %v543 = vunpack.c.h.b16 %v97
    %v544 = vunpack.c.l.b16 %v98
    %v545 = vunpack.c.l.b16 %v99
    %v546 = vunpack.c.h.b16 %v99
    %v547 = vunpack.c.l.b16 %v100
    %v548 = vunpack.c.l.b16 %v101
    %v549 = vunpack.c.h.b16 %v101
    %v550 = vunpack.c.l.b16 %v102
    %v551 = vunpack.c.l.b16 %v103
    %v552 = vunpack.c.h.b16 %v103
    %v553 = vunpack.c.l.b16 %v104
    %v554 = vunpack.c.l.b16 %v105
    %v555 = vunpack.c.h.b16 %v105
    %v556 = vunpack.c.l.b16 %v106
    %v557 = vunpack.c.l.b16 %v107
    %v558 = vunpack.c.h.b16 %v107
    %v559 = vunpack.c.l.b16 %v108
    %v560 = vunpack.c.l.b16 %v109
    %v561 = vunpack.c.h.b16 %v109
    %v562 = vunpack.c.l.b16 %v110
    %v563 = vunpack.c.l.b16 %v111
    %v564 = vunpack.c.h.b16 %v111
    %v565 = vunpack.c.l.b16 %v112
    %v566 = vunpack.c.l.b16 %v113
    %v567 = vunpack.c.h.b16 %v113
    %v568 = vunpack.c.l.b16 %v114
    %v569 = vunpack.c.l.b16 %v115
    %v570 = vunpack.c.h.b16 %v115
    %v571 = vunpack.c.l.b16 %v116
    %v572 = vunpack.c.l.b16 %v117
    %v573 = vunpack.c.h.b16 %v117
    %v574 = vunpack.c.l.b16 %v118
    %v575 = vunpack.c.l.b16 %v119
    %v576 = vunpack.c.h.b16 %v119
    %v577 = vunpack.c.l.b16 %v120
    %v578 = vunpack.c.l.b16 %v121
    %v579 = vunpack.c.h.b16 %v121
    %v580 = vunpack.c.l.b16 %v122
    %v581 = vunpack.c.l.b16 %v123
    %v582 = vunpack.c.h.b16 %v123
    %v583 = vunpack.c.l.b16 %v124
    %v584 = vunpack.c.l.b16 %v125
    %v585 = vunpack.c.h.b16 %v125
    %v586 = vunpack.c.l.b16 %v126
    %v587 = vunpack.c.l.b16 %v127
    %v588 = vunpack.c.h.b16 %v127
    %v589 = vunpack.c.l.b16 %v128
    %v590 = vunpack.c.l.b16 %v129
    %v591 = vunpack.c.h.b16 %v129
    %v592 = vunpack.c.l.b16 %v130
    %v593 = vunpack.c.l.b16 %v131
    %v594 = vunpack.c.h.b16 %v131
    %v595 = vunpack.c.l.b16 %v132
    %v596 = vunpack.c.l.b16 %v133
    %v597 = vunpack.c.h.b16 %v133
    %v598 = vunpack.c.l.b16 %v134
    %v599 = vunpack.c.l.b16 %v135
    %v600 = vunpack.c.h.b16 %v135
    %v601 = vunpack.c.l.b16 %v136
    %v602 = vunpack.c.l.b16 %v137
    %v603 = vunpack.c.h.b16 %v137
    %v604 = vunpack.c.l.b16 %v138
    %v605 = vunpack.c.l.b16 %v139
    %v606 = vunpack.c.h.b16 %v139
    %v607 = vunpack.c.l.b16 %v140
    %v608 = vunpack.c.l.b16 %v141
    %v609 = vunpack.c.h.b16 %v141
    %v610 = vunpack.c.l.b16 %v142
    %v611 = vunpack.c.l.b16 %v143
    %v612 = vunpack.c.h.b16 %v143
    %v613 = vunpack.c.l.b16 %v144
    %v614 = vunpack.c.l.b16 %v145
    %v615 = vunpack.c.h.b16 %v145
    %v616 = vunpack.c.l.b16 %v146
    %v617 = vunpack.c.l.b16 %v147
    %v618 = vunpack.c.h.b16 %v147
    %v619 = vunpack.c.l.b16 %v148
    %v620 = vunpack.c.l.b16 %v149
    %v621 = vunpack.c.h.b16 %v149
    %v622 = vunpack.c.l.b16 %v150
    %v623 = vunpack.c.l.b16 %v151
    %v624 = vunpack.c.h.b16 %v151
    %v625 = vunpack.c.l.b16 %v152
    %v626 = vunpack.c.l.b16 %v153
    %v627 = vunpack.c.h.b16 %v153
    %v628 = vunpack.c.l.b16 %v154
    %v629 = vunpack.c.l.b16 %v155
    %v630 = vunpack.c.h.b16 %v155
    %v631 = vunpack.c.l.b16 %v156
    %v632 = vunpack.c.l.b16 %v157
    %v633 = vunpack.c.h.b16 %v157
    %v634 = vunpack.c.l.b16 %v158
    %v635 = vunpack.c.l.b16 %v159
    %v636 = vunpack.c.h.b16 %v159
    %v637 = vunpack.c.l.b16 %v160
    %v638 = vunpack.c.l.b16 %v161
    %v639 = vunpack.c.h.b16 %v161
    %v640 = vunpack.c.l.b16 %v162
    %v641 = vunpack.c.l.b16 %v163
    %v642 = vunpack.c.h.b16 %v163
    %v643 = vunpack.c.l.b16 %v164
    %v644 = vunpack.c.l.b16 %v165
    %v645 = vunpack.c.h.b16 %v165
    %v646 = vunpack.c.l.b16 %v166
    %v647 = vunpack.c.l.b16 %v167
    %v648 = vunpack.c.h.b16 %v167
    %v649 = vunpack.c.l.b16 %v168
    %v650 = vunpack.c.l.b16 %v169
    %v651 = vunpack.c.h.b16 %v169
    %v652 = vunpack.c.l.b16 %v170
    %v653 = vunpack.c.l.b16 %v171
    %v654 = vunpack.c.h.b16 %v171
    %v655 = vunpack.c.l.b16 %v172
    %v656 = vunpack.c.l.b16 %v173
    %v657 = vunpack.c.h.b16 %v173
    %v658 = vunpack.c.l.b16 %v174
    %v659 = vunpack.c.l.b16 %v175
    %v660 = vunpack.c.h.b16 %v175
    %v661 = vunpack.c.l.b16 %v176
    %v662 = vunpack.c.l.b16 %v177
    %v663 = vunpack.c.h.b16 %v177
    %v664 = vunpack.c.l.b16 %v178
    %v665 = vunpack.c.l.b16 %v179
    %v666 = vunpack.c.h.b16 %v179
    %v667 = vunpack.c.l.b16 %v180
    %v668 = vunpack.c.l.b16 %v181
    %v669 = vunpack.c.h.b16 %v181
    %v670 = vunpack.c.l.b16 %v182
    %v671 = vunpack.c.l.b16 %v183
    %v672 = vunpack.c.h.b16 %v183
    %v673 = vunpack.c.l.b16 %v184
    %v674 = vunpack.c.l.b16 %v185
    %v675 = vunpack.c.h.b16 %v185
    %v676 = vunpack.c.l.b16 %v186
    %v677 = vunpack.c.l.b16 %v187
    %v678 = vunpack.c.h.b16 %v187
    %v679 = vunpack.c.l.b16 %v188
    %v680 = vunpack.c.l.b16 %v189
    %v681 = vunpack.c.h.b16 %v189
    %v682 = vunpack.c.l.b16 %v190
    %v683 = vunpack.c.l.b16 %v191
    %v684 = vunpack.c.h.b16 %v191
    %v685 = vunpack.c.l.b16 %v192
    %v686 = vunpack.c.l.b16 %v193
    %v687 = vunpack.c.h.b16 %v193
    %v688 = vunpack.c.l.b16 %v194
    %v689 = vunpack.c.l.b16 %v195
    %v690 = vunpack.c.h.b16 %v195
    %v691 = vunpack.c.l.b16 %v196
    %v692 = vunpack.c.l.b16 %v197
    %v693 = vunpack.c.h.b16 %v197
    %v694 = vunpack.c.l.b16 %v198
    %v695 = vunpack.c.l.b16 %v199
    %v696 = vunpack.c.h.b16 %v199
    %v697 = vunpack.c.l.b16 %v200
    %v698 = vunpack.c.l.b16 %v201
    %v699 = vunpack.c.h.b16 %v201
    %v700 = vunpack.c.l.b16 %v202
    %v701 = vunpack.c.l.b16 %v203
    %v702 = vunpack.c.h.b16 %v203
    %v703 = vunpack.c.l.b16 %v204
    %v704 = vunpack.c.l.b16 %v205
    %v705 = vunpack.c.h.b16 %v205
    %v706 = vunpack.c.l.b16 %v206
    %v707 = vunpack.c.l.b16 %v207
    %v708 = vunpack.c.h.b16 %v207
    %v709 = vunpack.c.l.b16 %v208
    %v710 = vunpack.c.l.b16 %v209
    %v711 = vunpack.c.h.b16 %v209
    %v712 = vunpack.c.l.b16 %v210
    %v713 = vunpack.c.l.b16 %v211
    %v714 = vunpack.c.h.b16 %v211
    %v715 = vunpack.c.l.b16 %v212
    %v716 = vunpack.c.l.b16 %v213
    %v717 = vunpack.c.h.b16 %v213
    %v718 = vunpack.c.l.b16 %v214
    %v719 = vunpack.c.l.b16 %v215
    %v720 = vunpack.c.h.b16 %v215
    %v721 = vunpack.c.l.b16 %v216
    %v722 = vunpack.c.l.b16 %v217
    %v723 = vunpack.c.h.b16 %v217
    %v724 = vunpack.c.l.b16 %v218
    %v725 = vunpack.c.l.b16 %v219
    %v726 = vunpack.c.h.b16 %v219
    %v727 = vunpack.c.l.b16 %v220
    %v728 = vunpack.c.l.b16 %v221
    %v729 = vunpack.c.h.b16 %v221
    %v730 = vunpack.c.l.b16 %v222
    %v731 = vunpack.c.l.b16 %v223
    %v732 = vunpack.c.h.b16 %v223
    %v733 = vunpack.c.l.b16 %v224
    %v734 = vunpack.c.l.b16 %v225
    %v735 = vunpack.c.h.b16 %v225
    %v736 = vunpack.c.l.b16 %v226
    %v737 = vunpack.c.l.b16 %v227
    %v738 = vunpack.c.h.b16 %v227
    %v739 = vunpack.c.l.b16 %v228
    %v740 = vunpack.c.l.b16 %v229
    %v741 = vunpack.c.h.b16 %v229
    %v742 = vunpack.c.l.b16 %v230
    %v743 = vunpack.c.l.b16 %v231
    %v744 = vunpack.c.h.b16 %v231
    %v745 = vunpack.c.l.b16 %v232
    %v746 = vunpack.c.l.b16 %v233
    %v747 = vunpack.c.h.b16 %v233
    %v748 = vunpack.c.l.b16 %v234
    %v749 = vunpack.c.l.b16 %v235
    %v750 = vunpack.c.h.b16 %v235
    %v751 = vunpack.c.l.b16 %v236
    %v752 = vunpack.c.l.b16 %v237
    %v753 = vunpack.c.h.b16 %v237
    %v754 = vunpack.c.l.b16 %v238
    %v755 = vunpack.c.l.b16 %v239
    %v756 = vunpack.c.h.b16 %v239
    %v757 = vunpack.c.l.b16 %v240
    %v758 = vunpack.c.l.b16 %v241
    %v759 = vunpack.c.h.b16 %v241
    %v760 = vunpack.c.l.b16 %v242
    %v761 = vunpack.c.l.b16 %v243
    %v762 = vunpack.c.h.b16 %v243
    %v763 = vunpack.c.l.b16 %v244
    %v764 = vunpack.c.l.b16 %v245
    %v765 = vunpack.c.h.b16 %v245
    %v766 = vunpack.c.l.b16 %v246
    %v767 = vunpack.c.l.b16 %v247
    %v768 = vunpack.c.h.b16 %v247
    %v769 = vunpack.c.l.b16 %v248
    %v770 = vunpack.c.l.b16 %v249
    %v771 = vunpack.c.h.b16 %v249
    %v772 = vunpack.c.l.b16 %v250
    %v773 = vunpack.c.l.b16 %v251
    %v774 = vunpack.c.h.b16 %v251
    %v775 = vunpack.c.l.b16 %v252
    %v776 = vunpack.c.l.b16 %v253
    %v777 = vunpack.c.h.b16 %v253
    %v778 = vunpack.c.l.b16 %v254
    %v779 = vunpack.c.l.b16 %v255
    %v780 = vunpack.c.h.b16 %v255
    %v781 = vunpack.c.l.b16 %v256
    %v782 = vunpack.c.l.b16 %v257
    %v783 = vunpack.c.h.b16 %v257
    %v784 = vunpack.c.l.b16 %v258
    %v785 = vunpack.c.l.b16 %v259
    %v786 = vunpack.c.h.b16 %v259
    %v787 = vunpack.c.l.b16 %v260
    %v788 = vpack.c.b16 %v503, %v500
    %v789 = vpack.c.b16 %v504, %v501
    %v790 = vpack.c.b16 %v505, %v502
    %v791 = vpack.c.b16 %v509, %v506
    %v792 = vpack.c.b16 %v510, %v507
    %v793 = vpack.c.b16 %v511, %v508
    %v794 = vpack.c.b16 %v515, %v512
    %v795 = vpack.c.b16 %v516, %v513
    %v796 = vpack.c.b16 %v517, %v514
    %v797 = vpack.c.b16 %v521, %v518
    %v798 = vpack.c.b16 %v522, %v519
    %v799 = vpack.c.b16 %v523, %v520
    %v800 = vpack.c.b16 %v527, %v524
    %v801 = vpack.c.b16 %v528, %v525
    %v802 = vpack.c.b16 %v529, %v526
    %v803 = vpack.c.b16 %v533, %v530
    %v804 = vpack.c.b16 %v534, %v531
    %v805 = vpack.c.b16 %v535, %v532
    %v806 = vpack.c.b16 %v539, %v536
    %v807 = vpack.c.b16 %v540, %v537
    %v808 = vpack.c.b16 %v541, %v538
    %v809 = vpack.c.b16 %v545, %v542
    %v810 = vpack.c.b16 %v546, %v543
    %v811 = vpack.c.b16 %v547, %v544
    %v812 = vpack.c.b16 %v551, %v548
    %v813 = vpack.c.b16 %v552, %v549
    %v814 = vpack.c.b16 %v553, %v550
    %v815 = vpack.c.b16 %v557, %v554
    %v816 = vpack.c.b16 %v558, %v555
    %v817 = vpack.c.b16 %v559, %v556
    %v818 = vpack.c.b16 %v563, %v560
    %v819 = vpack.c.b16 %v564, %v561
    %v820 = vpack.c.b16 %v565, %v562
    %v821 = vpack.c.b16 %v569, %v566
    %v822 = vpack.c.b16 %v570, %v567
    %v823 = vpack.c.b16 %v571, %v568
    %v824 = vpack.c.b16 %v575, %v572
    %v825 = vpack.c.b16 %v576, %v573
    %v826 = vpack.c.b16 %v577, %v574
    %v827 = vpack.c.b16 %v581, %v578
    %v828 = vpack.c.b16 %v582, %v579
    %v829 = vpack.c.b16 %v583, %v580
    %v830 = vpack.c.b16 %v587, %v584
    %v831 = vpack.c.b16 %v588, %v585
    %v832 = vpack.c.b16 %v589, %v586
    %v833 = vpack.c.b16 %v593, %v590
    %v834 = vpack.c.b16 %v594, %v591
    %v835 = vpack.c.b16 %v595, %v592
    %v836 = vpack.c.b16 %v599, %v596
    %v837 = vpack.c.b16 %v600, %v597
    %v838 = vpack.c.b16 %v601, %v598
    %v839 = vpack.c.b16 %v605, %v602
    %v840 = vpack.c.b16 %v606, %v603
    %v841 = vpack.c.b16 %v607, %v604
    %v842 = vpack.c.b16 %v611, %v608
    %v843 = vpack.c.b16 %v612, %v609
    %v844 = vpack.c.b16 %v613, %v610
    %v845 = vpack.c.b16 %v617, %v614
    %v846 = vpack.c.b16 %v618, %v615
    %v847 = vpack.c.b16 %v619, %v616
    %v848 = vpack.c.b16 %v623, %v620
    %v849 = vpack.c.b16 %v624, %v621
    %v850 = vpack.c.b16 %v625, %v622
    %v851 = vpack.c.b16 %v629, %v626
    %v852 = vpack.c.b16 %v630, %v627
    %v853 = vpack.c.b16 %v631, %v628
    %v854 = vpack.c.b16 %v635, %v632
    %v855 = vpack.c.b16 %v636, %v633
    %v856 = vpack.c.b16 %v637, %v634
    %v857 = vpack.c.b16 %v641, %v638
    %v858 = vpack.c.b16 %v642, %v639
    %v859 = vpack.c.b16 %v643, %v640
    %v860 = vpack.c.b16 %v647, %v644
    %v861 = vpack.c.b16 %v648, %v645
    %v862 = vpack.c.b16 %v649, %v646
    %v863 = vpack.c.b16 %v653, %v650
    %v864 = vpack.c.b16 %v654, %v651
    %v865 = vpack.c.b16 %v655, %v652
    %v866 = vpack.c.b16 %v659, %v656
    %v867 = vpack.c.b16 %v660, %v657
    %v868 = vpack.c.b16 %v661, %v658
    %v869 = vpack.c.b16 %v665, %v662
    %v870 = vpack.c.b16 %v666, %v663
    %v871 = vpack.c.b16 %v667, %v664
    %v872 = vpack.c.b16 %v671, %v668
    %v873 = vpack.c.b16 %v672, %v669
    %v874 = vpack.c.b16 %v673, %v670
    %v875 = vpack.c.b16 %v677, %v674
    %v876 = vpack.c.b16 %v678, %v675
    %v877 = vpack.c.b16 %v679, %v676
    %v878 = vpack.c.b16 %v683, %v680
    %v879 = vpack.c.b16 %v684, %v681
    %v880 = vpack.c.b16 %v685, %v682
    %v881 = vpack.c.b16 %v689, %v686
    %v882 = vpack.c.b16 %v690, %v687
    %v883 = vpack.c.b16 %v691, %v688
    %v884 = vpack.c.b16 %v695, %v692
    %v885 = vpack.c.b16 %v696, %v693
    %v886 = vpack.c.b16 %v697, %v694
    %v887 = vpack.c.b16 %v701, %v698
    %v888 = vpack.c.b16 %v702, %v699
    %v889 = vpack.c.b16 %v703, %v700
    %v890 = vpack.c.b16 %v707, %v704
    %v891 = vpack.c.b16 %v708, %v705
    %v892 = vpack.c.b16 %v709, %v706
    %v893 = vpack.c.b16 %v713, %v710
    %v894 = vpack.c.b16 %v714, %v711
    %v895 = vpack.c.b16 %v715, %v712
    %v896 = vpack.c.b16 %v719, %v716
    %v897 = vpack.c.b16 %v720, %v717
    %v898 = vpack.c.b16 %v721, %v718
    %v899 = vpack.c.b16 %v725, %v722
    %v900 = vpack.c.b16 %v726, %v723
    %v901 = vpack.c.b16 %v727, %v724
    %v902 = vpack.c.b16 %v731, %v728
    %v903 = vpack.c.b16 %v732, %v729
    %v904 = vpack.c.b16 %v733, %v730
    %v905 = vpack.c.b16 %v737, %v734
    %v906 = vpack.c.b16 %v738, %v735
    %v907 = vpack.c.b16 %v739, %v736
    %v908 = vpack.c.b16 %v743, %v740
    %v909 = vpack.c.b16 %v744, %v741
    %v910 = vpack.c.b16 %v745, %v742
    %v911 = vpack.c.b16 %v749, %v746
    %v912 = vpack.c.b16 %v750, %v747
    %v913 = vpack.c.b16 %v751, %v748
    %v914 = vpack.c.b16 %v755, %v752
    %v915 = vpack.c.b16 %v756, %v753
    %v916 = vpack.c.b16 %v757, %v754
    %v917 = vpack.c.b16 %v761, %v758
    %v918 = vpack.c.b16 %v762, %v759
    %v919 = vpack.c.b16 %v763, %v760
    %v920 = vpack.c.b16 %v767, %v764
    %v921 = vpack.c.b16 %v768, %v765
    %v922 = vpack.c.b16 %v769, %v766
    %v923 = vpack.c.b16 %v773, %v770
    %v924 = vpack.c.b16 %v774, %v771
    %v925 = vpack.c.b16 %v775, %v772
    %v926 = vpack.c.b16 %v779, %v776
    %v927 = vpack.c.b16 %v780, %v777
    %v928 = vpack.c.b16 %v781, %v778
    %v929 = vpack.c.b16 %v785, %v782
    %v930 = vpack.c.b16 %v786, %v783
    %v931 = vpack.c.b16 %v787, %v784
    %1076 = vmatprep.subr.bf16.mxu0 %v789
    %1077 = vmatpush1.bf16.msra.mxu0 %v788
    %1078 = vmatprep.subr.bf16.mxu0 %v792
    %1079 = vmatpush1.bf16.msra.mxu0 %v791
    %1080 = vmatprep.subr.bf16.mxu0 %v795
    %1081 = vmatpush1.bf16.msra.mxu0 %v794
    %1082 = vmatprep.subr.bf16.mxu0 %v798
    %1083 = vmatpush1.bf16.msra.mxu0 %v797
    %1084 = vmatprep.subr.bf16.mxu0 %v801
    %1085 = vmatpush1.bf16.msra.mxu0 %v800
    %1086 = vmatprep.subr.bf16.mxu0 %v804
    %1087 = vmatpush1.bf16.msra.mxu0 %v803
    %1088 = vmatprep.subr.bf16.mxu0 %v807
    %1089 = vmatpush1.bf16.msra.mxu0 %v806
    %1090 = vmatprep.subr.bf16.mxu0 %v810
    %1091 = vmatpush1.bf16.msra.mxu0 %v809
    %1092 = vmatprep.subr.bf16.mxu0 %v813
    %1093 = vmatpush1.bf16.msra.mxu0 %v812
    %1094 = vmatprep.subr.bf16.mxu0 %v816
    %1095 = vmatpush1.bf16.msra.mxu0 %v815
    %1096 = vmatprep.subr.bf16.mxu0 %v819
    %1097 = vmatpush1.bf16.msra.mxu0 %v818
    %1098 = vmatprep.subr.bf16.mxu0 %v822
    %1099 = vmatpush1.bf16.msra.mxu0 %v821
    %1100 = vmatprep.subr.bf16.mxu0 %v825
    %1101 = vmatpush1.bf16.msra.mxu0 %v824
    %1102 = vmatprep.subr.bf16.mxu0 %v828
    %1103 = vmatpush1.bf16.msra.mxu0 %v827
    %1104 = vmatprep.subr.bf16.mxu0 %v831
    %1105 = vmatpush1.bf16.msra.mxu0 %v830
    %1106 = vmatprep.subr.bf16.mxu0 %v834
    %1107 = vmatpush1.bf16.msra.mxu0 %v833
    %1108 = vmatprep.mubr.bf16.mxu0 %v297
    %1109 = vmatmul.mubr.bf16.gmra.mrb[0].mxu0 %v296
    %v1110 = vpop.f32.mrb[0].mxu0
    %v1111 = vadd.f32 %v266, %v1110
    %v1112 = vpop.f32.mrb[0].mxu0
    %v1113 = vadd.f32 %v270, %v1112
    %v1114 = vpop.f32.mrb[0].mxu0
    %v1115 = vadd.f32 %v266, %v1114
    %v1116 = vpop.f32.mrb[0].mxu0
    %v1117 = vadd.f32 %v270, %v1116
    %1118 = vdwg.mxu0
    %1119 = vmatprep.subr.bf16.mxu0 %v837
    %1120 = vmatpush1.bf16.msra.mxu0 %v836
    %1121 = vmatprep.subr.bf16.mxu0 %v840
    %1122 = vmatpush1.bf16.msra.mxu0 %v839
    %1123 = vmatprep.subr.bf16.mxu0 %v843
    %1124 = vmatpush1.bf16.msra.mxu0 %v842
    %1125 = vmatprep.subr.bf16.mxu0 %v846
    %1126 = vmatpush1.bf16.msra.mxu0 %v845
    %1127 = vmatprep.subr.bf16.mxu0 %v849
    %1128 = vmatpush1.bf16.msra.mxu0 %v848
    %1129 = vmatprep.subr.bf16.mxu0 %v852
    %1130 = vmatpush1.bf16.msra.mxu0 %v851
    %1131 = vmatprep.subr.bf16.mxu0 %v855
    %1132 = vmatpush1.bf16.msra.mxu0 %v854
    %1133 = vmatprep.subr.bf16.mxu0 %v858
    %1134 = vmatpush1.bf16.msra.mxu0 %v857
    %1135 = vmatprep.subr.bf16.mxu0 %v861
    %1136 = vmatpush1.bf16.msra.mxu0 %v860
    %1137 = vmatprep.subr.bf16.mxu0 %v864
    %1138 = vmatpush1.bf16.msra.mxu0 %v863
    %1139 = vmatprep.subr.bf16.mxu0 %v867
    %1140 = vmatpush1.bf16.msra.mxu0 %v866
    %1141 = vmatprep.subr.bf16.mxu0 %v870
    %1142 = vmatpush1.bf16.msra.mxu0 %v869
    %1143 = vmatprep.subr.bf16.mxu0 %v873
    %1144 = vmatpush1.bf16.msra.mxu0 %v872
    %1145 = vmatprep.subr.bf16.mxu0 %v876
    %1146 = vmatpush1.bf16.msra.mxu0 %v875
    %1147 = vmatprep.subr.bf16.mxu0 %v879
    %1148 = vmatpush1.bf16.msra.mxu0 %v878
    %1149 = vmatprep.subr.bf16.mxu0 %v882
    %1150 = vmatpush1.bf16.msra.mxu0 %v881
    %1151 = vmatprep.mubr.bf16.mxu0 %v299
    %1152 = vmatmul.mubr.bf16.gmra.mrb[0].mxu0 %v298
    %v1153 = vpop.f32.mrb[0].mxu0
    %v1154 = vadd.f32 %v1111, %v1153
    %v1155 = vpop.f32.mrb[0].mxu0
    %v1156 = vadd.f32 %v1113, %v1155
    %v1157 = vpop.f32.mrb[0].mxu0
    %v1158 = vadd.f32 %v1115, %v1157
    %v1159 = vpop.f32.mrb[0].mxu0
    %v1160 = vadd.f32 %v1117, %v1159
    %1161 = vdwg.mxu0
    %1162 = vmatprep.subr.bf16.mxu0 %v885
    %1163 = vmatpush1.bf16.msra.mxu0 %v884
    %1164 = vmatprep.subr.bf16.mxu0 %v888
    %1165 = vmatpush1.bf16.msra.mxu0 %v887
    %1166 = vmatprep.subr.bf16.mxu0 %v891
    %1167 = vmatpush1.bf16.msra.mxu0 %v890
    %1168 = vmatprep.subr.bf16.mxu0 %v894
    %1169 = vmatpush1.bf16.msra.mxu0 %v893
    %1170 = vmatprep.subr.bf16.mxu0 %v897
    %1171 = vmatpush1.bf16.msra.mxu0 %v896
    %1172 = vmatprep.subr.bf16.mxu0 %v900
    %1173 = vmatpush1.bf16.msra.mxu0 %v899
    %1174 = vmatprep.subr.bf16.mxu0 %v903
    %1175 = vmatpush1.bf16.msra.mxu0 %v902
    %1176 = vmatprep.subr.bf16.mxu0 %v906
    %1177 = vmatpush1.bf16.msra.mxu0 %v905
    %1178 = vmatprep.subr.bf16.mxu0 %v909
    %1179 = vmatpush1.bf16.msra.mxu0 %v908
    %1180 = vmatprep.subr.bf16.mxu0 %v912
    %1181 = vmatpush1.bf16.msra.mxu0 %v911
    %1182 = vmatprep.subr.bf16.mxu0 %v915
    %1183 = vmatpush1.bf16.msra.mxu0 %v914
    %1184 = vmatprep.subr.bf16.mxu0 %v918
    %1185 = vmatpush1.bf16.msra.mxu0 %v917
    %1186 = vmatprep.subr.bf16.mxu0 %v921
    %1187 = vmatpush1.bf16.msra.mxu0 %v920
    %1188 = vmatprep.subr.bf16.mxu0 %v924
    %1189 = vmatpush1.bf16.msra.mxu0 %v923
    %1190 = vmatprep.subr.bf16.mxu0 %v927
    %1191 = vmatpush1.bf16.msra.mxu0 %v926
    %1192 = vmatprep.subr.bf16.mxu0 %v930
    %1193 = vmatpush1.bf16.msra.mxu0 %v929
    %1194 = vmatprep.mubr.bf16.mxu0 %v301
    %1195 = vmatmul.mubr.bf16.gmra.mrb[0].mxu0 %v300
    %v1196 = vpop.f32.mrb[0].mxu0
    %v1197 = vadd.f32 %v1154, %v1196
    %v1198 = vpop.f32.mrb[0].mxu0
    %v1199 = vadd.f32 %v1156, %v1198
    %v1200 = vpop.f32.mrb[0].mxu0
    %v1201 = vadd.f32 %v1158, %v1200
    %v1202 = vpop.f32.mrb[0].mxu0
    %v1203 = vadd.f32 %v1160, %v1202
    %1204 = vdwg.mxu0
    %1205 = vmatprep.subr.bf16.mxu0 0
    %1206 = vmatpush1.bf16.msra.mxu0 %v790
    %1207 = vmatprep.subr.bf16.mxu0 0
    %1208 = vmatpush1.bf16.msra.mxu0 %v793
    %1209 = vmatprep.subr.bf16.mxu0 0
    %1210 = vmatpush1.bf16.msra.mxu0 %v796
    %1211 = vmatprep.subr.bf16.mxu0 0
    %1212 = vmatpush1.bf16.msra.mxu0 %v799
    %1213 = vmatprep.subr.bf16.mxu0 0
    %1214 = vmatpush1.bf16.msra.mxu0 %v802
    %1215 = vmatprep.subr.bf16.mxu0 0
    %1216 = vmatpush1.bf16.msra.mxu0 %v805
    %1217 = vmatprep.subr.bf16.mxu0 0
    %1218 = vmatpush1.bf16.msra.mxu0 %v808
    %1219 = vmatprep.subr.bf16.mxu0 0
    %1220 = vmatpush1.bf16.msra.mxu0 %v811
    %1221 = vmatprep.subr.bf16.mxu0 0
    %1222 = vmatpush1.bf16.msra.mxu0 %v814
    %1223 = vmatprep.subr.bf16.mxu0 0
    %1224 = vmatpush1.bf16.msra.mxu0 %v817
    %1225 = vmatprep.subr.bf16.mxu0 0
    %1226 = vmatpush1.bf16.msra.mxu0 %v820
    %1227 = vmatprep.subr.bf16.mxu0 0
    %1228 = vmatpush1.bf16.msra.mxu0 %v823
    %1229 = vmatprep.subr.bf16.mxu0 0
    %1230 = vmatpush1.bf16.msra.mxu0 %v826
    %1231 = vmatprep.subr.bf16.mxu0 0
    %1232 = vmatpush1.bf16.msra.mxu0 %v829
    %1233 = vmatprep.subr.bf16.mxu0 0
    %1234 = vmatpush1.bf16.msra.mxu0 %v832
    %1235 = vmatprep.subr.bf16.mxu0 0
    %1236 = vmatpush1.bf16.msra.mxu0 %v835
    %1237 = vmatprep.mubr.bf16.mxu0 %v297
    %1238 = vmatmul.mubr.bf16.gmra.mrb[0].mxu0 %v296
    %v1239 = vpop.f32.mrb[0].mxu0
    %v1240 = vadd.f32 %v274, %v1239
    %v1241 = vpop.f32.mrb[0].mxu0
    %v1242 = vpop.f32.mrb[0].mxu0
    %v1243 = vadd.f32 %v274, %v1242
    %v1244 = vpop.f32.mrb[0].mxu0
    %1245 = vdwg.mxu0
    %1246 = vmatprep.subr.bf16.mxu0 0
    %1247 = vmatpush1.bf16.msra.mxu0 %v838
    %1248 = vmatprep.subr.bf16.mxu0 0
    %1249 = vmatpush1.bf16.msra.mxu0 %v841
    %1250 = vmatprep.subr.bf16.mxu0 0
    %1251 = vmatpush1.bf16.msra.mxu0 %v844
    %1252 = vmatprep.subr.bf16.mxu0 0
    %1253 = vmatpush1.bf16.msra.mxu0 %v847
    %1254 = vmatprep.subr.bf16.mxu0 0
    %1255 = vmatpush1.bf16.msra.mxu0 %v850
    %1256 = vmatprep.subr.bf16.mxu0 0
    %1257 = vmatpush1.bf16.msra.mxu0 %v853
    %1258 = vmatprep.subr.bf16.mxu0 0
    %1259 = vmatpush1.bf16.msra.mxu0 %v856
    %1260 = vmatprep.subr.bf16.mxu0 0
    %1261 = vmatpush1.bf16.msra.mxu0 %v859
    %1262 = vmatprep.subr.bf16.mxu0 0
    %1263 = vmatpush1.bf16.msra.mxu0 %v862
    %1264 = vmatprep.subr.bf16.mxu0 0
    %1265 = vmatpush1.bf16.msra.mxu0 %v865
    %1266 = vmatprep.subr.bf16.mxu0 0
    %1267 = vmatpush1.bf16.msra.mxu0 %v868
    %1268 = vmatprep.subr.bf16.mxu0 0
    %1269 = vmatpush1.bf16.msra.mxu0 %v871
    %1270 = vmatprep.subr.bf16.mxu0 0
    %1271 = vmatpush1.bf16.msra.mxu0 %v874
    %1272 = vmatprep.subr.bf16.mxu0 0
    %1273 = vmatpush1.bf16.msra.mxu0 %v877
    %1274 = vmatprep.subr.bf16.mxu0 0
    %1275 = vmatpush1.bf16.msra.mxu0 %v880
    %1276 = vmatprep.subr.bf16.mxu0 0
    %1277 = vmatpush1.bf16.msra.mxu0 %v883
    %1278 = vmatprep.mubr.bf16.mxu0 %v299
    %1279 = vmatmul.mubr.bf16.gmra.mrb[0].mxu0 %v298
    %v1280 = vpop.f32.mrb[0].mxu0
    %v1281 = vadd.f32 %v1240, %v1280
    %v1282 = vpop.f32.mrb[0].mxu0
    %v1283 = vpop.f32.mrb[0].mxu0
    %v1284 = vadd.f32 %v1243, %v1283
    %v1285 = vpop.f32.mrb[0].mxu0
    %1286 = vdwg.mxu0
    %1287 = vmatprep.subr.bf16.mxu0 0
    %1288 = vmatpush1.bf16.msra.mxu0 %v886
    %1289 = vmatprep.subr.bf16.mxu0 0
    %1290 = vmatpush1.bf16.msra.mxu0 %v889
    %1291 = vmatprep.subr.bf16.mxu0 0
    %1292 = vmatpush1.bf16.msra.mxu0 %v892
    %1293 = vmatprep.subr.bf16.mxu0 0
    %1294 = vmatpush1.bf16.msra.mxu0 %v895
    %1295 = vmatprep.subr.bf16.mxu0 0
    %1296 = vmatpush1.bf16.msra.mxu0 %v898
    %1297 = vmatprep.subr.bf16.mxu0 0
    %1298 = vmatpush1.bf16.msra.mxu0 %v901
    %1299 = vmatprep.subr.bf16.mxu0 0
    %1300 = vmatpush1.bf16.msra.mxu0 %v904
    %1301 = vmatprep.subr.bf16.mxu0 0
    %1302 = vmatpush1.bf16.msra.mxu0 %v907
    %1303 = vmatprep.subr.bf16.mxu0 0
    %1304 = vmatpush1.bf16.msra.mxu0 %v910
    %1305 = vmatprep.subr.bf16.mxu0 0
    %1306 = vmatpush1.bf16.msra.mxu0 %v913
    %1307 = vmatprep.subr.bf16.mxu0 0
    %1308 = vmatpush1.bf16.msra.mxu0 %v916
    %1309 = vmatprep.subr.bf16.mxu0 0
    %1310 = vmatpush1.bf16.msra.mxu0 %v919
    %1311 = vmatprep.subr.bf16.mxu0 0
    %1312 = vmatpush1.bf16.msra.mxu0 %v922
    %1313 = vmatprep.subr.bf16.mxu0 0
    %1314 = vmatpush1.bf16.msra.mxu0 %v925
    %1315 = vmatprep.subr.bf16.mxu0 0
    %1316 = vmatpush1.bf16.msra.mxu0 %v928
    %1317 = vmatprep.subr.bf16.mxu0 0
    %1318 = vmatpush1.bf16.msra.mxu0 %v931
    %1319 = vmatprep.mubr.bf16.mxu0 %v301
    %1320 = vmatmul.mubr.bf16.gmra.mrb[0].mxu0 %v300
    %v1321 = vpop.f32.mrb[0].mxu0
    %v1322 = vadd.f32 %v1281, %v1321
    %v1323 = vpop.f32.mrb[0].mxu0
    %v1324 = vpop.f32.mrb[0].mxu0
    %v1325 = vadd.f32 %v1284, %v1324
    %v1326 = vpop.f32.mrb[0].mxu0
    %1327 = vdwg.mxu0
    %v1328 = vmax.f32 %v1197, 0.0
    %v1329 = vmax.f32 %v1199, 0.0
    %v1330 = vmax.f32 %v1322, 0.0
    %v1331 = vmax.f32 %v1201, 0.0
    %v1332 = vmax.f32 %v1203, 0.0
    %v1333 = vmax.f32 %v1325, 0.0
    %v1334 = vpack.c.bf16 %v1331, %v1328
    %v1335 = vpack.c.bf16 %v1332, %v1329
    %v1336 = vpack.c.bf16 %v1333, %v1330
    %v1337 = vld [vmem:[#allocation7] sm:$0xf]
    %v1338 = vld [vmem:[#allocation7 + $0x4] sm:$0xf]
    %v1339 = vld [vmem:[#allocation7 + $0x8] sm:$0xf]
    %v1340 = vld [vmem:[#allocation7 + $0xc] sm:$0xf]
    %v1341 = vld [vmem:[#allocation7 + $0x10] sm:$0xf]
    %v1342 = vld [vmem:[#allocation7 + $0x14] sm:$0xf]
    %v1343 = vld [vmem:[#allocation7 + $0x18] sm:$0xf]
    %v1344 = vld [vmem:[#allocation7 + $0x1c] sm:$0xf]
    %v1345 = vld [vmem:[#allocation7 + $0x20] sm:$0xf]
    %v1346 = vld [vmem:[#allocation7 + $0x24] sm:$0xf]
    %v1347 = vld [vmem:[#allocation7 + $0x28] sm:$0xf]
    %v1348 = vld [vmem:[#allocation7 + $0x2c] sm:$0xf]
    %v1349 = vld [vmem:[#allocation7 + $0x30] sm:$0xf]
    %v1350 = vld [vmem:[#allocation7 + $0x34] sm:$0xf]
    %v1351 = vld [vmem:[#allocation7 + $0x38] sm:$0xf]
    %v1352 = vld [vmem:[#allocation7 + $0x3c] sm:$0xf]
    %v1353 = vld [vmem:[#allocation7 + $0x40] sm:$0xf]
    %v1354 = vld [vmem:[#allocation7 + $0x44] sm:$0xf]
    %v1355 = vld [vmem:[#allocation7 + $0x48] sm:$0xf]
    %v1356 = vld [vmem:[#allocation7 + $0x4c] sm:$0xf]
    %v1357 = vld [vmem:[#allocation7 + $0x50] sm:$0xf]
    %v1358 = vld [vmem:[#allocation7 + $0x54] sm:$0xf]
    %v1359 = vld [vmem:[#allocation7 + $0x58] sm:$0xf]
    %v1360 = vld [vmem:[#allocation7 + $0x5c] sm:$0xf]
    %v1361 = vld [vmem:[#allocation7 + $0x60] sm:$0xf]
    %v1362 = vld [vmem:[#allocation7 + $0x64] sm:$0xf]
    %v1363 = vld [vmem:[#allocation7 + $0x68] sm:$0xf]
    %v1364 = vld [vmem:[#allocation7 + $0x6c] sm:$0xf]
    %v1365 = vld [vmem:[#allocation7 + $0x70] sm:$0xf]
    %v1366 = vld [vmem:[#allocation7 + $0x74] sm:$0xf]
    %v1367 = vld [vmem:[#allocation7 + $0x78] sm:$0xf]
    %v1368 = vld [vmem:[#allocation7 + $0x7c] sm:$0xf]
    %v1369 = vld [vmem:[#allocation7 + $0x80] sm:$0xf]
    %v1370 = vld [vmem:[#allocation7 + $0x84] sm:$0xf]
    %v1371 = vld [vmem:[#allocation7 + $0x88] sm:$0xf]
    %v1372 = vld [vmem:[#allocation7 + $0x8c] sm:$0xf]
    %v1373 = vld [vmem:[#allocation7 + $0x90] sm:$0xf]
    %v1374 = vld [vmem:[#allocation7 + $0x94] sm:$0xf]
    %v1375 = vld [vmem:[#allocation7 + $0x98] sm:$0xf]
    %v1376 = vld [vmem:[#allocation7 + $0x9c] sm:$0xf]
    %v1377 = vld [vmem:[#allocation7 + $0xa0] sm:$0xf]
    %v1378 = vld [vmem:[#allocation7 + $0xa4] sm:$0xf]
    %v1379 = vld [vmem:[#allocation7 + $0xa8] sm:$0xf]
    %v1380 = vld [vmem:[#allocation7 + $0xac] sm:$0xf]
    %v1381 = vld [vmem:[#allocation7 + $0xb0] sm:$0xf]
    %v1382 = vld [vmem:[#allocation7 + $0xb4] sm:$0xf]
    %v1383 = vld [vmem:[#allocation7 + $0xb8] sm:$0xf]
    %v1384 = vld [vmem:[#allocation7 + $0xbc] sm:$0xf]
    %v1385 = vld [vmem:[%s4] sm:$0x1]
    %v1387 = vlaneseq
    %v1388 = vshrl.u32 %v1387, 7
    %v1389 = vsub.s32 0, %v1388
    %v1390 = vrot.slane %v1385, %v1389
    %v1440 = vunpack.c.l.b16 %v1337
    %v1441 = vunpack.c.l.b16 %v1338
    %v1442 = vunpack.c.l.b16 %v1339
    %v1443 = vunpack.c.l.b16 %v1340
    %v1444 = vunpack.c.l.b16 %v1341
    %v1445 = vunpack.c.l.b16 %v1342
    %v1446 = vunpack.c.l.b16 %v1343
    %v1447 = vunpack.c.l.b16 %v1344
    %v1448 = vunpack.c.l.b16 %v1345
    %v1449 = vunpack.c.l.b16 %v1346
    %v1450 = vunpack.c.l.b16 %v1347
    %v1451 = vunpack.c.l.b16 %v1348
    %v1452 = vunpack.c.l.b16 %v1349
    %v1453 = vunpack.c.l.b16 %v1350
    %v1454 = vunpack.c.l.b16 %v1351
    %v1455 = vunpack.c.l.b16 %v1352
    %v1456 = vunpack.c.l.b16 %v1353
    %v1457 = vunpack.c.l.b16 %v1354
    %v1458 = vunpack.c.l.b16 %v1355
    %v1459 = vunpack.c.l.b16 %v1356
    %v1460 = vunpack.c.l.b16 %v1357
    %v1461 = vunpack.c.l.b16 %v1358
    %v1462 = vunpack.c.l.b16 %v1359
    %v1463 = vunpack.c.l.b16 %v1360
    %v1464 = vunpack.c.l.b16 %v1361
    %v1465 = vunpack.c.l.b16 %v1362
    %v1466 = vunpack.c.l.b16 %v1363
    %v1467 = vunpack.c.l.b16 %v1364
    %v1468 = vunpack.c.l.b16 %v1365
    %v1469 = vunpack.c.l.b16 %v1366
    %v1470 = vunpack.c.l.b16 %v1367
    %v1471 = vunpack.c.l.b16 %v1368
    %v1472 = vunpack.c.l.b16 %v1369
    %v1473 = vunpack.c.l.b16 %v1370
    %v1474 = vunpack.c.l.b16 %v1371
    %v1475 = vunpack.c.l.b16 %v1372
    %v1476 = vunpack.c.l.b16 %v1373
    %v1477 = vunpack.c.l.b16 %v1374
    %v1478 = vunpack.c.l.b16 %v1375
    %v1479 = vunpack.c.l.b16 %v1376
    %v1480 = vunpack.c.l.b16 %v1377
    %v1481 = vunpack.c.l.b16 %v1378
    %v1482 = vunpack.c.l.b16 %v1379
    %v1483 = vunpack.c.l.b16 %v1380
    %v1484 = vunpack.c.l.b16 %v1381
    %v1485 = vunpack.c.l.b16 %v1382
    %v1486 = vunpack.c.l.b16 %v1383
    %v1487 = vunpack.c.l.b16 %v1384
    %v1488 = vpack.c.b16 %v1441, %v1440
    %v1489 = vpack.c.b16 %v1443, %v1442
    %v1490 = vpack.c.b16 %v1445, %v1444
    %v1491 = vpack.c.b16 %v1447, %v1446
    %v1492 = vpack.c.b16 %v1449, %v1448
    %v1493 = vpack.c.b16 %v1451, %v1450
    %v1494 = vpack.c.b16 %v1453, %v1452
    %v1495 = vpack.c.b16 %v1455, %v1454
    %v1496 = vpack.c.b16 %v1457, %v1456
    %v1497 = vpack.c.b16 %v1459, %v1458
    %v1498 = vpack.c.b16 %v1461, %v1460
    %v1499 = vpack.c.b16 %v1463, %v1462
    %v1500 = vpack.c.b16 %v1465, %v1464
    %v1501 = vpack.c.b16 %v1467, %v1466
    %v1502 = vpack.c.b16 %v1469, %v1468
    %v1503 = vpack.c.b16 %v1471, %v1470
    %v1504 = vpack.c.b16 %v1473, %v1472
    %v1505 = vpack.c.b16 %v1475, %v1474
    %v1506 = vpack.c.b16 %v1477, %v1476
    %v1507 = vpack.c.b16 %v1479, %v1478
    %v1508 = vpack.c.b16 %v1481, %v1480
    %v1509 = vpack.c.b16 %v1483, %v1482
    %v1510 = vpack.c.b16 %v1485, %v1484
    %v1511 = vpack.c.b16 %v1487, %v1486
    %1536 = vmatprep.subr.bf16.mxu0 0
    %1537 = vmatpush1.bf16.msra.mxu0 %v1488
    %1538 = vmatprep.subr.bf16.mxu0 0
    %1539 = vmatpush1.bf16.msra.mxu0 %v1489
    %1540 = vmatprep.subr.bf16.mxu0 0
    %1541 = vmatpush1.bf16.msra.mxu0 %v1490
    %1542 = vmatprep.subr.bf16.mxu0 0
    %1543 = vmatpush1.bf16.msra.mxu0 %v1491
    %1544 = vmatprep.subr.bf16.mxu0 0
    %1545 = vmatpush1.bf16.msra.mxu0 %v1492
    %1546 = vmatprep.subr.bf16.mxu0 0
    %1547 = vmatpush1.bf16.msra.mxu0 %v1493
    %1548 = vmatprep.subr.bf16.mxu0 0
    %1549 = vmatpush1.bf16.msra.mxu0 %v1494
    %1550 = vmatprep.subr.bf16.mxu0 0
    %1551 = vmatpush1.bf16.msra.mxu0 %v1495
    %1552 = vmatprep.subr.bf16.mxu0 0
    %1553 = vmatpush1.bf16.msra.mxu0 %v1496
    %1554 = vmatprep.subr.bf16.mxu0 0
    %1555 = vmatpush1.bf16.msra.mxu0 %v1497
    %1556 = vmatprep.subr.bf16.mxu0 0
    %1557 = vmatpush1.bf16.msra.mxu0 %v1498
    %1558 = vmatprep.subr.bf16.mxu0 0
    %1559 = vmatpush1.bf16.msra.mxu0 %v1499
    %1560 = vmatprep.subr.bf16.mxu0 0
    %1561 = vmatpush1.bf16.msra.mxu0 %v1500
    %1562 = vmatprep.subr.bf16.mxu0 0
    %1563 = vmatpush1.bf16.msra.mxu0 %v1501
    %1564 = vmatprep.subr.bf16.mxu0 0
    %1565 = vmatpush1.bf16.msra.mxu0 %v1502
    %1566 = vmatprep.subr.bf16.mxu0 0
    %1567 = vmatpush1.bf16.msra.mxu0 %v1503
    %1568 = vmatprep.mubr.bf16.mxu0 %v1335
    %1569 = vmatmul.mubr.bf16.gmra.mrb[0].mxu0 %v1334
    %v1570 = vpop.f32.mrb[0].mxu0
    %v1571 = vadd.f32 %v1390, %v1570
    %v1572 = vpop.f32.mrb[0].mxu0
    %v1573 = vpop.f32.mrb[0].mxu0
    %v1574 = vadd.f32 %v1390, %v1573
    %v1575 = vpop.f32.mrb[0].mxu0
    %1576 = vdwg.mxu0
    %1577 = vmatprep.subr.bf16.mxu0 0
    %1578 = vmatpush1.bf16.msra.mxu0 %v1504
    %1579 = vmatprep.subr.bf16.mxu0 0
    %1580 = vmatpush1.bf16.msra.mxu0 %v1505
    %1581 = vmatprep.subr.bf16.mxu0 0
    %1582 = vmatpush1.bf16.msra.mxu0 %v1506
    %1583 = vmatprep.subr.bf16.mxu0 0
    %1584 = vmatpush1.bf16.msra.mxu0 %v1507
    %1585 = vmatprep.subr.bf16.mxu0 0
    %1586 = vmatpush1.bf16.msra.mxu0 %v1508
    %1587 = vmatprep.subr.bf16.mxu0 0
    %1588 = vmatpush1.bf16.msra.mxu0 %v1509
    %1589 = vmatprep.subr.bf16.mxu0 0
    %1590 = vmatpush1.bf16.msra.mxu0 %v1510
    %1591 = vmatprep.subr.bf16.mxu0 0
    %1592 = vmatpush1.bf16.msra.mxu0 %v1511
    %1593 = vmatprep.subr.bf16.mxu0 0
    %1594 = vmatpush1.bf16.msra.mxu0 0
    %1595 = vmatprep.subr.bf16.mxu0 0
    %1596 = vmatpush1.bf16.msra.mxu0 0
    %1597 = vmatprep.subr.bf16.mxu0 0
    %1598 = vmatpush1.bf16.msra.mxu0 0
    %1599 = vmatprep.subr.bf16.mxu0 0
    %1600 = vmatpush1.bf16.msra.mxu0 0
    %1601 = vmatprep.subr.bf16.mxu0 0
    %1602 = vmatpush1.bf16.msra.mxu0 0
    %1603 = vmatprep.subr.bf16.mxu0 0
    %1604 = vmatpush1.bf16.msra.mxu0 0
    %1605 = vmatprep.subr.bf16.mxu0 0
    %1606 = vmatpush1.bf16.msra.mxu0 0
    %1607 = vmatprep.subr.bf16.mxu0 0
    %1608 = vmatpush1.bf16.msra.mxu0 0
    %1609 = vmatprep.mubr.bf16.mxu0 0
    %1610 = vmatmul.mubr.bf16.gmra.mrb[0].mxu0 %v1336
    %v1611 = vpop.f32.mrb[0].mxu0
    %v1612 = vadd.f32 %v1571, %v1611
    %v1613 = vpop.f32.mrb[0].mxu0
    %v1614 = vpop.f32.mrb[0].mxu0
    %v1615 = vadd.f32 %v1574, %v1614
    %v1616 = vpop.f32.mrb[0].mxu0
    %1617 = vdwg.mxu0
    %1618 = vst [vmem:[#allocation8] sm:$0xff] %v1612
    %1619 = vst [vmem:[#allocation8 + $0x8] sm:$0xff] %v1615
    // Predicated region
    $region34: #{tpu_custom_call.1} parent=1 // pred_check
      _
    $region35: #{tpu_custom_call.1} parent=1 // pred_check_branch
      %1621 = sbr.rel (0) target = $region37
    $region36: #{tpu_custom_call.1} parent=1 // pred_region
      %s1623 = ssub.s32 256, 256
      %1624 = vsyncadd [#allocation4], %s1623
      %s1625 = sshll.u32 [#allocation8], 4
      %s1626 = int_to_ptr.vmem [resolvable:$true] %s1625
      %1631 = dma.vmem_to_hbm [thread:$0]  %s1626, 256, %s5, [#allocation4], 128, 128, 8
    $region37: #{tpu_custom_call.1} parent=1 // pred_fallthru
      _
    // Predicated region
    $region38: #{tpu_custom_call.1} parent=1 // pred_check
      _
    $region39: #{tpu_custom_call.1} parent=1 // pred_check_branch
      %1633 = sbr.rel (0) target = $region41
    $region40: #{tpu_custom_call.1} parent=1 // pred_region
      %1634 = dma.done [#allocation4], 256
    $region41: #{tpu_custom_call.1} parent=1 // pred_fallthru
      _
    %1635 = vsyncpa [#allocation3], 1
    %1636 = vsyncpa [#allocation6], 1
    %1637 = vsyncpa [#allocation4], 1

</llo_original>
